<compile_context>
chip_gen: v6e
topology: v6e:2x2x1
jax: 0.10.0
libtpu: 0.0.40
codegen_flags: <defaults>
</compile_context>

<pallas_src>
import functools

import jax
import jax.numpy as jnp
import numpy as np
from jax import lax
from jax.experimental import pallas as pl
from jax.experimental.pallas import tpu as pltpu


def _pick_cout_tile(C):
    # C_out tile. Channel counts not divisible by 128 fall back to tn = C
    # (correct, but pays lane padding in the weight/output tiles).
    for tn in (256, 128):
        if C % tn == 0:
            return tn
    return C


def _vmem_limit_bytes(block_bytes):
    """Footprint-derived scoped-VMEM limit (blocks + headroom, capped at HW)."""
    try:
        cap = int(pltpu.get_tpu_info().vmem_capacity_bytes)
    except Exception:
        cap = 128 * 1024 * 1024
    want = int(block_bytes * 5 // 4) + (2 << 20)   # +25% + 2 MiB Mosaic headroom
    return max(min(want, cap), 16 << 20)


def _downsample_kernel(x_ref, w_ref, b_ref, o_ref, tap_ref, *, Ho, Wo):
    # x_ref:   (1, 2, 2, Ho+1, Wo+1, C)  phase-split padded NHWC image (bf16)
    # w_ref:   (tn, 9*C)                 weight tile, last axis = (tap, C_in), bf16
    # b_ref:   (tn, 1)                   bias tile (f32)
    # o_ref:   (1, tn, M)                output tile, lane-dense over M = Ho*Wo
    # tap_ref: (M, 9*C)                  staged tap operands (bf16 scratch,
    #                                    persistent across grid iterations)
    C = x_ref.shape[-1]
    M = Ho * Wo

    # Stage the nine kernel-tap operands once per image; reused for every
    # C_out tile j on this core (j axis is sequential / "arbitrary").
    @pl.when(pl.program_id(1) == 0)
    def _():
        for kh in range(3):
            for kw in range(3):
                t = kh * 3 + kw
                # Tap (kh, kw): padded rows 2*oh+kh, cols 2*ow+kw ==
                # phase (kh % 2, kw % 2), contiguous offset (kh//2, kw//2).
                xt = x_ref[0, kh % 2, kw % 2,
                           pl.ds(kh // 2, Ho), pl.ds(kw // 2, Wo), :]
                tap_ref[:, pl.ds(t * C, C)] = xt.reshape(M, C)

    # Single fused MXU contraction, K = 9*C: accumulation stays inside the MXU
    # pass (no per-tap f32 read-modify-write of the (tn, M) tile).  Bias is
    # folded into the one f32 epilogue pass.
    out = lax.dot_general(
        w_ref[...], tap_ref[...],
        dimension_numbers=(((1,), (1,)), ((), ())),
        preferred_element_type=jnp.float32)
    o_ref[0] = (out + b_ref[...]).astype(o_ref.dtype)


@jax.jit
def downsample_pallas(x_nchw, weight_oihw, bias):
    """Strided 3x3 conv, stride=2, padding=1, C_in == C_out (PyTorch Downsample).

    Args:
      x_nchw:      (N, C, H, W)
      weight_oihw: (C, C, 3, 3)   PyTorch Conv2d layout
      bias:        (C,)
    Returns:
      (N, C, Ho, Wo) with Ho = (H - 1)//2 + 1, Wo = (W - 1)//2 + 1
    """
    N, C, H, W = x_nchw.shape
    Ho = (H + 2 - 3) // 2 + 1
    Wo = (W + 2 - 3) // 2 + 1
    M = Ho * Wo

    # --- wrapper glue: one bf16 relayout pass ---------------------------------
    # Cast to bf16 BEFORE any relayout (halves the bytes of every HBM pass),
    # pad (extra zero row/col when H/W odd so the 2x2 stride phases are uniform),
    # then a single fused phase-split + NCHW->NHWC transpose.
    pad_h = 1 + (H % 2)
    pad_w = 1 + (W % 2)
    Hph = (H + 1 + pad_h) // 2   # = Ho + 1
    Wph = (W + 1 + pad_w) // 2   # = Wo + 1
    x = x_nchw.astype(jnp.bfloat16)
    x = jnp.pad(x, ((0, 0), (0, 0), (1, pad_h), (1, pad_w)))
    x = x.reshape(N, C, Hph, 2, Wph, 2)
    x = jnp.transpose(x, (0, 3, 5, 2, 4, 1))          # (N, 2, 2, Hph, Wph, C)

    # weight: (C_out, C_in, kh, kw) -> (C_out, 9*C_in), last axis (tap, C_in)
    # so it matches the staged-tap layout (K = 9*C contraction); bf16.
    w = jnp.transpose(weight_oihw, (0, 2, 3, 1)).reshape(C, 9 * C)
    w = w.astype(jnp.bfloat16)
    b = bias.astype(jnp.float32).reshape(C, 1)

    tn = _pick_cout_tile(C)
    grid = (N, C // tn)

    out_itemsize = jnp.dtype(x_nchw.dtype).itemsize
    block_bytes = (
        2 * (2 * 2 * Hph * Wph * C * 2)   # phase-split image block (dbl-buffered bf16)
        + 2 * (tn * 9 * C * 2)            # weight tile (dbl-buffered bf16)
        + 2 * (tn * 4)                    # bias tile (f32)
        + 2 * (tn * M * out_itemsize)     # output tile (dbl-buffered)
        + (M * 9 * C * 2)                 # staged-tap scratch (bf16, persistent)
    )

    out_ncm = pl.pallas_call(
        functools.partial(_downsample_kernel, Ho=Ho, Wo=Wo),
        out_shape=jax.ShapeDtypeStruct((N, C, M), x_nchw.dtype),
        grid_spec=pltpu.PrefetchScalarGridSpec(
            num_scalar_prefetch=0,
            grid=grid,
            in_specs=[
                # TODO(synk): pipeline_mode=pl.Buffered(1) here would halve the
                # largest VMEM resident on v7x (this block changes once per image).
                pl.BlockSpec((1, 2, 2, Hph, Wph, C),
                             lambda n, j: (n, 0, 0, 0, 0, 0)),
                pl.BlockSpec((tn, 9 * C), lambda n, j: (j, 0)),
                pl.BlockSpec((tn, 1), lambda n, j: (j, 0)),
            ],
            out_specs=pl.BlockSpec((1, tn, M), lambda n, j: (n, j, 0)),
            scratch_shapes=[pltpu.VMEM((M, 9 * C), jnp.bfloat16)],
        ),
        compiler_params=pltpu.CompilerParams(
            # j (C_out-tile) axis MUST stay "arbitrary": tap staging under
            # pl.when(j == 0) is reused across all j on the same core.
            dimension_semantics=("parallel", "arbitrary"),
            vmem_limit_bytes=_vmem_limit_bytes(block_bytes),
        ),
    )(x, w, b)

    # (N, C, M) -> (N, C, Ho, Wo): pure reshape, no transpose.
    # TODO(synk): emit bf16 here if the consumer tolerates it (halves output HBM).
    return out_ncm.reshape(N, C, Ho, Wo)


def _reference_conv(x_nchw, weight_oihw, bias, precision=None):
    out = lax.conv_general_dilated(
        x_nchw, weight_oihw,
        window_strides=(2, 2),
        padding=((1, 1), (1, 1)),
        dimension_numbers=("NCHW", "OIHW", "NCHW"),
        precision=precision)
    return out + bias.reshape(1, -1, 1, 1)


if __name__ == "__main__":
    key = jax.random.PRNGKey(0)
    k_x, k_w, k_b = jax.random.split(key, 3)

    N, C, H, W = 2, 4, 16, 16
    x = jax.random.normal(k_x, (N, C, H, W), dtype=jnp.float32)

    # Deterministic Conv2d-like parameter init (same shapes as nn.Conv2d(C, C, 3)).
    fan_in = C * 3 * 3
    bound = 1.0 / np.sqrt(fan_in)
    weight = jax.random.uniform(k_w, (C, C, 3, 3), jnp.float32, -bound, bound)
    bias = jax.random.uniform(k_b, (C,), jnp.float32, -bound, bound)

    out = downsample_pallas(x, weight, bias)
    jax.block_until_ready(out)
    assert out.shape == (N, C, H // 2, W // 2), out.shape

    # Exact-ish check: reference f32 conv on the bf16-rounded operands (the
    # kernel runs the MXU in bf16 with f32 accumulation).
    x_bf = x.astype(jnp.bfloat16).astype(jnp.float32)
    w_bf = weight.astype(jnp.bfloat16).astype(jnp.float32)
    ref_bf = _reference_conv(x_bf, w_bf, bias, precision=lax.Precision.HIGHEST)
    np.testing.assert_allclose(np.asarray(out), np.asarray(ref_bf),
                               rtol=1e-3, atol=1e-3)

    # Sanity check against the true f32 conv (only bf16 quantization error).
    ref_f32 = _reference_conv(x, weight, bias, precision=lax.Precision.HIGHEST)
    np.testing.assert_allclose(np.asarray(out), np.asarray(ref_f32),
                               rtol=5e-2, atol=5e-2)

    print("KERNEL_OK")
</pallas_src>

<mosaic_0001>
module attributes {stable_mosaic.version = 11 : i64} {
  func.func @_downsample_kernel(%arg0: i32, %arg1: i32, %arg2: memref<1x2x2x9x9x4xbf16, #tpu.memory_space<vmem>>, %arg3: memref<4x36xbf16, #tpu.memory_space<vmem>>, %arg4: memref<4x1xf32, #tpu.memory_space<vmem>>, %arg5: memref<1x4x64xf32, #tpu.memory_space<vmem>>, %arg6: memref<64x36xbf16, #tpu.memory_space<vmem>>) attributes {dimension_semantics = [#tpu.dimension_semantics<parallel>, #tpu.dimension_semantics<arbitrary>], iteration_bounds = array<i64: 2, 1>, scalar_prefetch = 0 : i64, scratch_operands = 1 : i64, tpu.core_type = #tpu.core_type<tc>, window_params = [{transform_indices = @transform_0, window_bounds = array<i64: 1, 2, 2, 9, 9, 4>}, {transform_indices = @transform_1, window_bounds = array<i64: 4, 36>}, {transform_indices = @transform_2, window_bounds = array<i64: 4, 1>}, {transform_indices = @transform_3, window_bounds = array<i64: 1, 4, 64>}]} {
    %c0_i32 = arith.constant 0 : i32
    %0 = arith.cmpi eq, %arg1, %c0_i32 : i32
    %1 = arith.extui %0 : i1 to i32
    %c0_i32_0 = arith.constant 0 : i32
    %2 = arith.cmpi ne, %1, %c0_i32_0 : i32
    scf.if %2 {
      %c0_9 = arith.constant 0 : index
      %c0_10 = arith.constant 0 : index
      %c0_11 = arith.constant 0 : index
      %c0_12 = arith.constant 0 : index
      %c0_13 = arith.constant 0 : index
      %c0_14 = arith.constant 0 : index
      %12 = vector.load %arg2[%c0_9, %c0_10, %c0_11, %c0_12, %c0_13, %c0_14] : memref<1x2x2x9x9x4xbf16, #tpu.memory_space<vmem>>, vector<1x1x1x8x8x4xbf16>
      %13 = vector.shape_cast %12 : vector<1x1x1x8x8x4xbf16> to vector<8x8x4xbf16>
      %14 = vector.shape_cast %13 : vector<8x8x4xbf16> to vector<64x4xbf16>
      %c0_15 = arith.constant 0 : index
      %c0_16 = arith.constant 0 : index
      %15 = vector.load %arg6[%c0_15, %c0_16] : memref<64x36xbf16, #tpu.memory_space<vmem>>, vector<64x4xbf16>
      tpu.vector_store %arg6[%c0_15, %c0_16], %14 {strides = array<i32>} : memref<64x36xbf16, #tpu.memory_space<vmem>>, vector<64x4xbf16>,
      %c0_17 = arith.constant 0 : index
      %c0_18 = arith.constant 0 : index
      %c1 = arith.constant 1 : index
      %c0_19 = arith.constant 0 : index
      %c0_20 = arith.constant 0 : index
      %c0_21 = arith.constant 0 : index
      %16 = vector.load %arg2[%c0_17, %c0_18, %c1, %c0_19, %c0_20, %c0_21] : memref<1x2x2x9x9x4xbf16, #tpu.memory_space<vmem>>, vector<1x1x1x8x8x4xbf16>
      %17 = vector.shape_cast %16 : vector<1x1x1x8x8x4xbf16> to vector<8x8x4xbf16>
      %18 = vector.shape_cast %17 : vector<8x8x4xbf16> to vector<64x4xbf16>
      %c0_22 = arith.constant 0 : index
      %c4 = arith.constant 4 : index
      %19 = vector.load %arg6[%c0_22, %c4] : memref<64x36xbf16, #tpu.memory_space<vmem>>, vector<64x4xbf16>
      tpu.vector_store %arg6[%c0_22, %c4], %18 {strides = array<i32>} : memref<64x36xbf16, #tpu.memory_space<vmem>>, vector<64x4xbf16>,
      %c0_23 = arith.constant 0 : index
      %c0_24 = arith.constant 0 : index
      %c0_25 = arith.constant 0 : index
      %c0_26 = arith.constant 0 : index
      %c1_27 = arith.constant 1 : index
      %c0_28 = arith.constant 0 : index
      %20 = vector.load %arg2[%c0_23, %c0_24, %c0_25, %c0_26, %c1_27, %c0_28] : memref<1x2x2x9x9x4xbf16, #tpu.memory_space<vmem>>, vector<1x1x1x8x8x4xbf16>
      %21 = vector.shape_cast %20 : vector<1x1x1x8x8x4xbf16> to vector<8x8x4xbf16>
      %22 = vector.shape_cast %21 : vector<8x8x4xbf16> to vector<64x4xbf16>
      %c0_29 = arith.constant 0 : index
      %c8 = arith.constant 8 : index
      %23 = vector.load %arg6[%c0_29, %c8] : memref<64x36xbf16, #tpu.memory_space<vmem>>, vector<64x4xbf16>
      tpu.vector_store %arg6[%c0_29, %c8], %22 {strides = array<i32>} : memref<64x36xbf16, #tpu.memory_space<vmem>>, vector<64x4xbf16>,
      %c0_30 = arith.constant 0 : index
      %c1_31 = arith.constant 1 : index
      %c0_32 = arith.constant 0 : index
      %c0_33 = arith.constant 0 : index
      %c0_34 = arith.constant 0 : index
      %c0_35 = arith.constant 0 : index
      %24 = vector.load %arg2[%c0_30, %c1_31, %c0_32, %c0_33, %c0_34, %c0_35] : memref<1x2x2x9x9x4xbf16, #tpu.memory_space<vmem>>, vector<1x1x1x8x8x4xbf16>
      %25 = vector.shape_cast %24 : vector<1x1x1x8x8x4xbf16> to vector<8x8x4xbf16>
      %26 = vector.shape_cast %25 : vector<8x8x4xbf16> to vector<64x4xbf16>
      %c0_36 = arith.constant 0 : index
      %c12 = arith.constant 12 : index
      %27 = vector.load %arg6[%c0_36, %c12] : memref<64x36xbf16, #tpu.memory_space<vmem>>, vector<64x4xbf16>
      tpu.vector_store %arg6[%c0_36, %c12], %26 {strides = array<i32>} : memref<64x36xbf16, #tpu.memory_space<vmem>>, vector<64x4xbf16>,
      %c0_37 = arith.constant 0 : index
      %c1_38 = arith.constant 1 : index
      %c1_39 = arith.constant 1 : index
      %c0_40 = arith.constant 0 : index
      %c0_41 = arith.constant 0 : index
      %c0_42 = arith.constant 0 : index
      %28 = vector.load %arg2[%c0_37, %c1_38, %c1_39, %c0_40, %c0_41, %c0_42] : memref<1x2x2x9x9x4xbf16, #tpu.memory_space<vmem>>, vector<1x1x1x8x8x4xbf16>
      %29 = vector.shape_cast %28 : vector<1x1x1x8x8x4xbf16> to vector<8x8x4xbf16>
      %30 = vector.shape_cast %29 : vector<8x8x4xbf16> to vector<64x4xbf16>
      %c0_43 = arith.constant 0 : index
      %c16 = arith.constant 16 : index
      %31 = vector.load %arg6[%c0_43, %c16] : memref<64x36xbf16, #tpu.memory_space<vmem>>, vector<64x4xbf16>
      tpu.vector_store %arg6[%c0_43, %c16], %30 {strides = array<i32>} : memref<64x36xbf16, #tpu.memory_space<vmem>>, vector<64x4xbf16>,
      %c0_44 = arith.constant 0 : index
      %c1_45 = arith.constant 1 : index
      %c0_46 = arith.constant 0 : index
      %c0_47 = arith.constant 0 : index
      %c1_48 = arith.constant 1 : index
      %c0_49 = arith.constant 0 : index
      %32 = vector.load %arg2[%c0_44, %c1_45, %c0_46, %c0_47, %c1_48, %c0_49] : memref<1x2x2x9x9x4xbf16, #tpu.memory_space<vmem>>, vector<1x1x1x8x8x4xbf16>
      %33 = vector.shape_cast %32 : vector<1x1x1x8x8x4xbf16> to vector<8x8x4xbf16>
      %34 = vector.shape_cast %33 : vector<8x8x4xbf16> to vector<64x4xbf16>
      %c0_50 = arith.constant 0 : index
      %c20 = arith.constant 20 : index
      %35 = vector.load %arg6[%c0_50, %c20] : memref<64x36xbf16, #tpu.memory_space<vmem>>, vector<64x4xbf16>
      tpu.vector_store %arg6[%c0_50, %c20], %34 {strides = array<i32>} : memref<64x36xbf16, #tpu.memory_space<vmem>>, vector<64x4xbf16>,
      %c0_51 = arith.constant 0 : index
      %c0_52 = arith.constant 0 : index
      %c0_53 = arith.constant 0 : index
      %c1_54 = arith.constant 1 : index
      %c0_55 = arith.constant 0 : index
      %c0_56 = arith.constant 0 : index
      %36 = vector.load %arg2[%c0_51, %c0_52, %c0_53, %c1_54, %c0_55, %c0_56] : memref<1x2x2x9x9x4xbf16, #tpu.memory_space<vmem>>, vector<1x1x1x8x8x4xbf16>
      %37 = vector.shape_cast %36 : vector<1x1x1x8x8x4xbf16> to vector<8x8x4xbf16>
      %38 = vector.shape_cast %37 : vector<8x8x4xbf16> to vector<64x4xbf16>
      %c0_57 = arith.constant 0 : index
      %c24 = arith.constant 24 : index
      %39 = vector.load %arg6[%c0_57, %c24] : memref<64x36xbf16, #tpu.memory_space<vmem>>, vector<64x4xbf16>
      tpu.vector_store %arg6[%c0_57, %c24], %38 {strides = array<i32>} : memref<64x36xbf16, #tpu.memory_space<vmem>>, vector<64x4xbf16>,
      %c0_58 = arith.constant 0 : index
      %c0_59 = arith.constant 0 : index
      %c1_60 = arith.constant 1 : index
      %c1_61 = arith.constant 1 : index
      %c0_62 = arith.constant 0 : index
      %c0_63 = arith.constant 0 : index
      %40 = vector.load %arg2[%c0_58, %c0_59, %c1_60, %c1_61, %c0_62, %c0_63] : memref<1x2x2x9x9x4xbf16, #tpu.memory_space<vmem>>, vector<1x1x1x8x8x4xbf16>
      %41 = vector.shape_cast %40 : vector<1x1x1x8x8x4xbf16> to vector<8x8x4xbf16>
      %42 = vector.shape_cast %41 : vector<8x8x4xbf16> to vector<64x4xbf16>
      %c0_64 = arith.constant 0 : index
      %c28 = arith.constant 28 : index
      %43 = vector.load %arg6[%c0_64, %c28] : memref<64x36xbf16, #tpu.memory_space<vmem>>, vector<64x4xbf16>
      tpu.vector_store %arg6[%c0_64, %c28], %42 {strides = array<i32>} : memref<64x36xbf16, #tpu.memory_space<vmem>>, vector<64x4xbf16>,
      %c0_65 = arith.constant 0 : index
      %c0_66 = arith.constant 0 : index
      %c0_67 = arith.constant 0 : index
      %c1_68 = arith.constant 1 : index
      %c1_69 = arith.constant 1 : index
      %c0_70 = arith.constant 0 : index
      %44 = vector.load %arg2[%c0_65, %c0_66, %c0_67, %c1_68, %c1_69, %c0_70] : memref<1x2x2x9x9x4xbf16, #tpu.memory_space<vmem>>, vector<1x1x1x8x8x4xbf16>
      %45 = vector.shape_cast %44 : vector<1x1x1x8x8x4xbf16> to vector<8x8x4xbf16>
      %46 = vector.shape_cast %45 : vector<8x8x4xbf16> to vector<64x4xbf16>
      %c0_71 = arith.constant 0 : index
      %c32 = arith.constant 32 : index
      %47 = vector.load %arg6[%c0_71, %c32] : memref<64x36xbf16, #tpu.memory_space<vmem>>, vector<64x4xbf16>
      tpu.vector_store %arg6[%c0_71, %c32], %46 {strides = array<i32>} : memref<64x36xbf16, #tpu.memory_space<vmem>>, vector<64x4xbf16>,
    } else {
    }
    %c0 = arith.constant 0 : index
    %c0_1 = arith.constant 0 : index
    %3 = vector.load %arg3[%c0, %c0_1] : memref<4x36xbf16, #tpu.memory_space<vmem>>, vector<4x36xbf16>
    %c0_2 = arith.constant 0 : index
    %c0_3 = arith.constant 0 : index
    %4 = vector.load %arg6[%c0_2, %c0_3] : memref<64x36xbf16, #tpu.memory_space<vmem>>, vector<64x36xbf16>
    %cst = arith.constant dense<0.000000e+00> : vector<4x64xf32>
    %5 = tpu.matmul %3, %4, %cst {dimension_numbers = #tpu.dot_dimension_numbers<[1], [1], [0], [0], [0, 0, 1, 0], [], []>} : vector<4x36xbf16>, vector<64x36xbf16>, vector<4x64xf32> -> vector<4x64xf32>
    %c0_4 = arith.constant 0 : index
    %c0_5 = arith.constant 0 : index
    %6 = vector.load %arg4[%c0_4, %c0_5] : memref<4x1xf32, #tpu.memory_space<vmem>>, vector<4x1xf32>
    %7 = vector.broadcast %6 : vector<4x1xf32> to vector<4x64xf32>
    %8 = arith.addf %5, %7 : vector<4x64xf32>
    %c0_6 = arith.constant 0 : index
    %c0_7 = arith.constant 0 : index
    %c0_8 = arith.constant 0 : index
    %9 = vector.load %arg5[%c0_6, %c0_7, %c0_8] : memref<1x4x64xf32, #tpu.memory_space<vmem>>, vector<1x4x64xf32>
    %10 = vector.shape_cast %9 : vector<1x4x64xf32> to vector<4x64xf32>
    %11 = vector.shape_cast %8 : vector<4x64xf32> to vector<1x4x64xf32>
    tpu.vector_store %arg5[%c0_6, %c0_7, %c0_8], %11 {strides = array<i32>} : memref<1x4x64xf32, #tpu.memory_space<vmem>>, vector<1x4x64xf32>,
    return
  }
  func.func @transform_0(%arg0: i32, %arg1: i32) -> (i32, i32, i32, i32, i32, i32) {
    %c0_i32 = arith.constant 0 : i32
    %c0_i32_0 = arith.constant 0 : i32
    %c0_i32_1 = arith.constant 0 : i32
    %c0_i32_2 = arith.constant 0 : i32
    %c0_i32_3 = arith.constant 0 : i32
    %c0_i32_4 = arith.constant 0 : i32
    return %arg0, %c0_i32, %c0_i32_0, %c0_i32_1, %c0_i32_2, %c0_i32_3 : i32, i32, i32, i32, i32, i32
  }
  func.func @transform_1(%arg0: i32, %arg1: i32) -> (i32, i32) {
    %c0_i32 = arith.constant 0 : i32
    %c0_i32_0 = arith.constant 0 : i32
    return %arg1, %c0_i32 : i32, i32
  }
  func.func @transform_2(%arg0: i32, %arg1: i32) -> (i32, i32) {
    %c0_i32 = arith.constant 0 : i32
    %c0_i32_0 = arith.constant 0 : i32
    return %arg1, %c0_i32 : i32, i32
  }
  func.func @transform_3(%arg0: i32, %arg1: i32) -> (i32, i32, i32) {
    %c0_i32 = arith.constant 0 : i32
    %c0_i32_0 = arith.constant 0 : i32
    return %arg0, %arg1, %c0_i32 : i32, i32, i32
  }
}

</mosaic_0001>

<llo_original>
// kernel: downsample_pallas.1
$region0: #{downsample_pallas.1}
  #allocation0 [shape = 'u32[]', space=smem, size = 0x4, offset = 0x4, fixed_abs, tag = 'smem constant byte address 0x4 - core index']
  #allocation1 [shape = 'u32[144,128]{1,0:T(1,128)}', space=vmem, size = 0x12000, scoped, tag = 'internal scratch']
  #allocation2 [shape = 'bf16[64,36]{1,0:T(8,128)(2,1)}', space=vmem, size = 0x4000, scoped, tag = 'scratch operand']
  %s0 = inlined_call_operand.vmem [shape: bf16[2,2,2,9,9,4], index: 0, kind: input, shape index: {}]
  %s1 = inlined_call_operand.vmem [shape: bf16[4,36], index: 1, kind: input, shape index: {}]
  %s2 = inlined_call_operand.vmem [shape: f32[4,1], index: 2, kind: input, shape index: {}]
  %s3 = inlined_call_operand.vmem [shape: f32[2,4,64], index: 3, kind: output, shape index: {}]
  %s4 = sld [smem:[#allocation0]]
  $region49: #{downsample_pallas.1} parent=0
    _
  %s6 = ssub.s32 1, %s4
  %s7 = scalar_select 0, %s6, %s4
  loop: start=0, step=1, limit=4
  $region2: #{downsample_pallas.1} parent=0 // loop_pre_header
    _
  $region3: #{downsample_pallas.1} parent=0 // loop_header
    %s9 = sphi 0, %s13
    %p10 = scmp.ge.s32.totalorder %s9, 4
    %s16 = sphi 0, %s28
    %s17 = sphi 0, %s24
    %s18 = sphi 0, %s16
    %s19 = sphi 0, %s17
    %s20 = sphi 0, %s18
    %s21 = sphi 0, %s19
    %s31 = sphi 0, %s33
    %s34 = sphi 0, %s31
    %s35 = sphi 0, %s34
    %s51 = sphi 0, %s35
    %s57 = sphi 0, %s59
    %s60 = sphi 0, %s57
    %s61 = sphi 0, %s60
    %s77 = sphi 0, %s61
    %s83 = sphi 0, %s85
    %s86 = sphi 0, %s83
    %s87 = sphi 0, %s86
    %s103 = sphi 0, %s87
    %s111 = sphi 0, %s113
    %s114 = sphi 0, %s111
    %s115 = sphi 0, %s114
    %s131 = sphi 0, %s115
  $region4: #{downsample_pallas.1} parent=0 // loop_header_branch
    %12 = sbr.rel (%p10) target = $region8
  $region5: #{downsample_pallas.1} parent=0 // loop_body
    %s14 = ssub.s32 %s9, 1
    %s15 = ssub.s32 %s9, 2
    %s22 = sadd.s32 1, %s17
    %p23 = scmp.ge.s32.totalorder %s22, 1
    %s24 = scalar_select %p23, 0, %s22
    %s25 = sadd.s32 1, %s16
    %s26 = scalar_select %p23, %s25, %s16
    %p27 = scmp.ge.s32.totalorder %s26, 2
    %s28 = scalar_select %p27, 0, %s26
    %s29 = ssub.s32 %s16, %s28
    %p30 = scmp.eq.s32.totalorder %s29, 0
    %s32 = sadd.s32 %s31, 1
    %s33 = scalar_select %p30, %s31, %s32
    %p36 = pneg %p30
    %p37 = scmp.eq.s32.totalorder %s9, 1
    %p38 = por %p36, %p37
    %p39 = scmp.ne.s32.totalorder %s31, %s34
    %p40 = scmp.eq.s32.totalorder %s9, 0
    %p41 = por %p39, %p40
    %p42 = scmp.ne.s32.totalorder %s31, %s34
    %p43 = scmp.eq.s32.totalorder %s14, 1
    %p44 = por %p42, %p43
    %p45 = scmp.ne.s32.totalorder %s34, %s35
    %p46 = scmp.eq.s32.totalorder %s14, 0
    %p47 = por %p45, %p46
    %p48 = scmp.ne.s32.totalorder %s34, %s35
    %p49 = scmp.eq.s32.totalorder %s15, 1
    %p50 = por %p48, %p49
    %p52 = scmp.ne.s32.totalorder %s35, %s51
    %p53 = scmp.eq.s32.totalorder %s15, 0
    %p54 = por %p52, %p53
    %s55 = ssub.s32 %s17, %s24
    %p56 = scmp.eq.s32.totalorder %s55, 0
    %s58 = sadd.s32 %s57, 1
    %s59 = scalar_select %p56, %s57, %s58
    %p62 = pneg %p56
    %p63 = scmp.eq.s32.totalorder %s9, 1
    %p64 = por %p62, %p63
    %p65 = scmp.ne.s32.totalorder %s57, %s60
    %p66 = scmp.eq.s32.totalorder %s9, 0
    %p67 = por %p65, %p66
    %p68 = scmp.ne.s32.totalorder %s57, %s60
    %p69 = scmp.eq.s32.totalorder %s14, 1
    %p70 = por %p68, %p69
    %p71 = scmp.ne.s32.totalorder %s60, %s61
    %p72 = scmp.eq.s32.totalorder %s14, 0
    %p73 = por %p71, %p72
    %p74 = scmp.ne.s32.totalorder %s60, %s61
    %p75 = scmp.eq.s32.totalorder %s15, 1
    %p76 = por %p74, %p75
    %p78 = scmp.ne.s32.totalorder %s61, %s77
    %p79 = scmp.eq.s32.totalorder %s15, 0
    %p80 = por %p78, %p79
    %s81 = ssub.s32 %s17, %s24
    %p82 = scmp.eq.s32.totalorder %s81, 0
    %s84 = sadd.s32 %s83, 1
    %s85 = scalar_select %p82, %s83, %s84
    %p88 = pneg %p82
    %p89 = scmp.eq.s32.totalorder %s9, 1
    %p90 = por %p88, %p89
    %p91 = scmp.ne.s32.totalorder %s83, %s86
    %p92 = scmp.eq.s32.totalorder %s9, 0
    %p93 = por %p91, %p92
    %p94 = scmp.ne.s32.totalorder %s83, %s86
    %p95 = scmp.eq.s32.totalorder %s14, 1
    %p96 = por %p94, %p95
    %p97 = scmp.ne.s32.totalorder %s86, %s87
    %p98 = scmp.eq.s32.totalorder %s14, 0
    %p99 = por %p97, %p98
    %p100 = scmp.ne.s32.totalorder %s86, %s87
    %p101 = scmp.eq.s32.totalorder %s15, 1
    %p102 = por %p100, %p101
    %p104 = scmp.ne.s32.totalorder %s87, %s103
    %p105 = scmp.eq.s32.totalorder %s15, 0
    %p106 = por %p104, %p105
    %s107 = ssub.s32 %s16, %s28
    %s108 = ssub.s32 %s17, %s24
    %s109 = sor.u32 %s107, %s108
    %p110 = scmp.eq.s32.totalorder %s109, 0
    %s112 = sadd.s32 %s111, 1
    %s113 = scalar_select %p110, %s111, %s112
    %p116 = pneg %p110
    %p117 = scmp.eq.s32.totalorder %s9, 1
    %p118 = por %p116, %p117
    %p119 = scmp.ne.s32.totalorder %s111, %s114
    %p120 = scmp.eq.s32.totalorder %s9, 0
    %p121 = por %p119, %p120
    %p122 = scmp.ne.s32.totalorder %s111, %s114
    %p123 = scmp.eq.s32.totalorder %s14, 1
    %p124 = por %p122, %p123
    %p125 = scmp.ne.s32.totalorder %s114, %s115
    %p126 = scmp.eq.s32.totalorder %s14, 0
    %p127 = por %p125, %p126
    %p128 = scmp.ne.s32.totalorder %s114, %s115
    %p129 = scmp.eq.s32.totalorder %s15, 1
    %p130 = por %p128, %p129
    %p132 = scmp.ne.s32.totalorder %s115, %s131
    %p133 = scmp.eq.s32.totalorder %s15, 0
    %p134 = por %p132, %p133
    %p135 = scmp.le.s32.totalorder 1, %s9
    %p136 = scmp.lt.s32.totalorder %s9, 3
    %p137 = pnand %p135, %p136
    %p138 = pneg %p137
    // Predicated region
    $region9: #{downsample_pallas.1} parent=5 // pred_check
      _
    $region10: #{downsample_pallas.1} parent=5 // pred_check_branch
      %140 = sbr.rel (%p137) target = $region12
    $region11: #{downsample_pallas.1} parent=5 // pred_region
      %s141 = ssub.s32 %s9, 1
      // Predicated region
      $region13: #{downsample_pallas.1} parent=11 // pred_check
        %p142 = pneg %p73
      $region14: #{downsample_pallas.1} parent=11 // pred_check_branch
        %144 = sbr.rel (%p142) target = $region16
      $region15: #{downsample_pallas.1} parent=11 // pred_region
        %p145 = scmp.lt.s32.totalorder %s19, 0
        %s146 = scalar_select %p145, %s19, 0
        %s147 = smul.addr %s146, 2
        %s148 = scalar_lea.vmem %s1, %s147
      $region16: #{downsample_pallas.1} parent=11 // pred_fallthru
        _
      // Predicated region
      $region17: #{downsample_pallas.1} parent=11 // pred_check
        %p149 = pneg %p99
      $region18: #{downsample_pallas.1} parent=11 // pred_check_branch
        %151 = sbr.rel (%p149) target = $region20
      $region19: #{downsample_pallas.1} parent=11 // pred_region
        %p152 = scmp.lt.s32.totalorder %s19, 0
        %s153 = scalar_select %p152, %s19, 0
        %s154 = smul.addr %s153, 4
        %s155 = scalar_lea.vmem %s2, %s154
      $region20: #{downsample_pallas.1} parent=11 // pred_fallthru
        _
    $region12: #{downsample_pallas.1} parent=5 // pred_fallthru
      _
    %p156 = scmp.lt.s32.totalorder %s9, 2
    // Predicated region
    $region21: #{downsample_pallas.1} parent=5 // pred_check
      %p157 = pneg %p156
    $region22: #{downsample_pallas.1} parent=5 // pred_check_branch
      %159 = sbr.rel (%p157) target = $region24
    $region23: #{downsample_pallas.1} parent=5 // pred_region
      // Predicated region
      $region25: #{downsample_pallas.1} parent=23 // pred_check
        %p160 = pneg %p41
      $region26: #{downsample_pallas.1} parent=23 // pred_check_branch
        %162 = sbr.rel (%p160) target = $region28
      $region27: #{downsample_pallas.1} parent=23 // pred_region
        %p163 = scmp.lt.s32.totalorder %s16, 1
        %s164 = scalar_select %p163, %s16, 1
        %s165 = smul.addr %s164, 72
        %s166 = smul.addr %s165, 4
        %s167 = scalar_lea.vmem %s0, %s166
      $region28: #{downsample_pallas.1} parent=23 // pred_fallthru
        _
    $region24: #{downsample_pallas.1} parent=5 // pred_fallthru
      _
    %p168 = scmp.le.s32.totalorder 1, %s9
    %p169 = scmp.lt.s32.totalorder %s9, 3
    %p170 = pnand %p168, %p169
    %p171 = pneg %p170
    // Predicated region
    $region29: #{downsample_pallas.1} parent=5 // pred_check
      _
    $region30: #{downsample_pallas.1} parent=5 // pred_check_branch
      %173 = sbr.rel (%p170) target = $region32
    $region31: #{downsample_pallas.1} parent=5 // pred_region
      %s174 = ssub.s32 %s9, 1
      %p175 = scmp.lt.s32.totalorder %s18, 1
      %s176 = scalar_select %p175, %s18, 1
      %s177 = smul.addr %s176, 72
      %s178 = smul.addr %s177, 4
      %s179 = scalar_lea.vmem %s0, %s178
      %p180 = pneg %p47
      %p181 = pneg %p44
      %p182 = scmp.lt.s32.totalorder %s19, 0
      %s183 = scalar_select %p182, %s19, 0
      %s184 = smul.addr %s183, 2
      %s185 = scalar_lea.vmem %s1, %s184
      %p186 = pneg %p73
      %p187 = pneg %p70
      %p188 = scmp.lt.s32.totalorder %s19, 0
      %s189 = scalar_select %p188, %s19, 0
      %s190 = smul.addr %s189, 4
      %s191 = scalar_lea.vmem %s2, %s190
      %p192 = pneg %p99
      %p193 = pneg %p96
      %p194 = pneg %p127
      %p195 = pneg %p124
      %p196 = scmp.lt.s32.totalorder %s18, 1
      %s197 = scalar_select %p196, %s18, 1
      %p198 = scmp.lt.s32.totalorder %s19, 0
      %s199 = scalar_select %p198, %s19, 0
      %s200 = sadd.s32 %s199, %s197
      %s201 = smul.addr %s200, 4
      %s202 = scalar_lea.vmem %s3, %s201
      %p203 = scmp.lt.s32.totalorder %s18, 1
      %s204 = scalar_select %p203, %s18, 1
      %s205 = smul.addr %s204, 72
      %s206 = smul.addr %s205, 4
      %s207 = scalar_lea.vmem %s0, %s206
      %p208 = scmp.lt.s32.totalorder %s19, 0
      %s209 = scalar_select %p208, %s19, 0
      %s210 = smul.addr %s209, 2
      %s211 = scalar_lea.vmem %s1, %s210
      %p212 = scmp.lt.s32.totalorder %s19, 0
      %s213 = scalar_select %p212, %s19, 0
      %s214 = smul.addr %s213, 4
      %s215 = scalar_lea.vmem %s2, %s214
      %p216 = scmp.lt.s32.totalorder %s18, 1
      %s217 = scalar_select %p216, %s18, 1
      %p218 = scmp.lt.s32.totalorder %s19, 0
      %s219 = scalar_select %p218, %s19, 0
      %s220 = sadd.s32 %s219, %s217
      %s221 = smul.addr %s220, 4
      %s222 = scalar_lea.vmem %s3, %s221
      %p224 = scmp.eq.s32.totalorder %s19, 0
      // Predicated region
      $region33: #{downsample_pallas.1} parent=31 // pred_check
        %p225 = pneg %p224
      $region34: #{downsample_pallas.1} parent=31 // pred_check_branch
        %227 = sbr.rel (%p225) target = $region36
      $region35: #{downsample_pallas.1} parent=31 // pred_region
        %v228 = vld [vmem:[%s207] sm:$0xf]
        %v229 = vld [vmem:[%s207 + $0x8] sm:$0xf]
        %v230 = vld [vmem:[%s207 + $0x10] sm:$0xf]
        %v231 = vld [vmem:[%s207 + $0x18] sm:$0xf]
        %v232 = vld [vmem:[%s207 + $0x20] sm:$0xf]
        %v233 = vld [vmem:[%s207 + $0x28] sm:$0xf]
        %v234 = vld [vmem:[%s207 + $0x30] sm:$0xf]
        %v235 = vld [vmem:[%s207 + $0x38] sm:$0xf]
        %vm236 = vcmask 27648
        %237 = vst.msk [vmem:[#allocation2] sm:$0xf] %vm236, %v228
        %238 = vst.msk [vmem:[#allocation2 + $0x4] sm:$0xf] %vm236, %v229
        %239 = vst.msk [vmem:[#allocation2 + $0x8] sm:$0xf] %vm236, %v230
        %240 = vst.msk [vmem:[#allocation2 + $0xc] sm:$0xf] %vm236, %v231
        %241 = vst.msk [vmem:[#allocation2 + $0x10] sm:$0xf] %vm236, %v232
        %242 = vst.msk [vmem:[#allocation2 + $0x14] sm:$0xf] %vm236, %v233
        %243 = vst.msk [vmem:[#allocation2 + $0x18] sm:$0xf] %vm236, %v234
        %244 = vst.msk [vmem:[#allocation2 + $0x1c] sm:$0xf] %vm236, %v235
        %s245 = scalar_lea.vmem %s207, 72
        %v246 = vld [vmem:[%s245] sm:$0xf]
        %v247 = vld [vmem:[%s245 + $0x8] sm:$0xf]
        %v248 = vld [vmem:[%s245 + $0x10] sm:$0xf]
        %v249 = vld [vmem:[%s245 + $0x18] sm:$0xf]
        %v250 = vld [vmem:[%s245 + $0x20] sm:$0xf]
        %v251 = vld [vmem:[%s245 + $0x28] sm:$0xf]
        %v252 = vld [vmem:[%s245 + $0x30] sm:$0xf]
        %v253 = vld [vmem:[%s245 + $0x38] sm:$0xf]
        %262 = vrot.lane.b32.xlu0 %v246, 4
        %v263 = vpop.permute.xlu0 %262
        %264 = vrot.lane.b32.xlu0 %v247, 4
        %v265 = vpop.permute.xlu0 %264
        %266 = vrot.lane.b32.xlu0 %v248, 4
        %v267 = vpop.permute.xlu0 %266
        %268 = vrot.lane.b32.xlu0 %v249, 4
        %v269 = vpop.permute.xlu0 %268
        %270 = vrot.lane.b32.xlu0 %v250, 4
        %v271 = vpop.permute.xlu0 %270
        %272 = vrot.lane.b32.xlu0 %v251, 4
        %v273 = vpop.permute.xlu0 %272
        %274 = vrot.lane.b32.xlu0 %v252, 4
        %v275 = vpop.permute.xlu0 %274
        %276 = vrot.lane.b32.xlu0 %v253, 4
        %v277 = vpop.permute.xlu0 %276
        %vm286 = vcmask 60448
        %287 = vst.msk [vmem:[#allocation2] sm:$0xf] %vm286, %v263
        %288 = vst.msk [vmem:[#allocation2 + $0x4] sm:$0xf] %vm286, %v265
        %289 = vst.msk [vmem:[#allocation2 + $0x8] sm:$0xf] %vm286, %v267
        %290 = vst.msk [vmem:[#allocation2 + $0xc] sm:$0xf] %vm286, %v269
        %291 = vst.msk [vmem:[#allocation2 + $0x10] sm:$0xf] %vm286, %v271
        %292 = vst.msk [vmem:[#allocation2 + $0x14] sm:$0xf] %vm286, %v273
        %293 = vst.msk [vmem:[#allocation2 + $0x18] sm:$0xf] %vm286, %v275
        %294 = vst.msk [vmem:[#allocation2 + $0x1c] sm:$0xf] %vm286, %v277
        %v295 = vld [vmem:[%s207] sm:$0xf]
        %v296 = vld [vmem:[%s207 + $0x4] sm:$0x1]
        %v297 = vld [vmem:[%s207 + $0x8] sm:$0xf]
        %v298 = vld [vmem:[%s207 + $0xc] sm:$0x1]
        %v299 = vld [vmem:[%s207 + $0x10] sm:$0xf]
        %v300 = vld [vmem:[%s207 + $0x14] sm:$0x1]
        %v301 = vld [vmem:[%s207 + $0x18] sm:$0xf]
        %v302 = vld [vmem:[%s207 + $0x1c] sm:$0x1]
        %v303 = vld [vmem:[%s207 + $0x20] sm:$0xf]
        %v304 = vld [vmem:[%s207 + $0x24] sm:$0x1]
        %v305 = vld [vmem:[%s207 + $0x28] sm:$0xf]
        %v306 = vld [vmem:[%s207 + $0x2c] sm:$0x1]
        %v307 = vld [vmem:[%s207 + $0x30] sm:$0xf]
        %v308 = vld [vmem:[%s207 + $0x34] sm:$0x1]
        %v309 = vld [vmem:[%s207 + $0x38] sm:$0xf]
        %v310 = vld [vmem:[%s207 + $0x3c] sm:$0x1]
        %vm311 = vsmask.f32 3328
        %vm312 = vsmask.f32 7440
        %vm313 = vmor %vm311, %vm312
        %v315 = vshrl.u32 %v295, 16
        %v317 = vrot.slane %v315, 4
        %v318 = vshll.u32 %v295, 16
        %v320 = vrot.slane %v318, 5
        %v321 = vor.u32 %v317, %v320
        %v322 = vrot.slane %v321, 4
        %v324 = vshll.u32 %v296, 16
        %v326 = vrot.slane %v324, 5
        %v327 = vsel %vm313, %v322, %v326
        %v329 = vshrl.u32 %v297, 16
        %v331 = vrot.slane %v329, 4
        %v332 = vshll.u32 %v297, 16
        %v334 = vrot.slane %v332, 5
        %v335 = vor.u32 %v331, %v334
        %v336 = vrot.slane %v335, 4
        %v338 = vshll.u32 %v298, 16
        %v340 = vrot.slane %v338, 5
        %v341 = vsel %vm313, %v336, %v340
        %v343 = vshrl.u32 %v299, 16
        %v345 = vrot.slane %v343, 4
        %v346 = vshll.u32 %v299, 16
        %v348 = vrot.slane %v346, 5
        %v349 = vor.u32 %v345, %v348
        %v350 = vrot.slane %v349, 4
        %v352 = vshll.u32 %v300, 16
        %v354 = vrot.slane %v352, 5
        %v355 = vsel %vm313, %v350, %v354
        %v357 = vshrl.u32 %v301, 16
        %v359 = vrot.slane %v357, 4
        %v360 = vshll.u32 %v301, 16
        %v362 = vrot.slane %v360, 5
        %v363 = vor.u32 %v359, %v362
        %v364 = vrot.slane %v363, 4
        %v366 = vshll.u32 %v302, 16
        %v368 = vrot.slane %v366, 5
        %v369 = vsel %vm313, %v364, %v368
        %v371 = vshrl.u32 %v303, 16
        %v373 = vrot.slane %v371, 4
        %v374 = vshll.u32 %v303, 16
        %v376 = vrot.slane %v374, 5
        %v377 = vor.u32 %v373, %v376
        %v378 = vrot.slane %v377, 4
        %v380 = vshll.u32 %v304, 16
        %v382 = vrot.slane %v380, 5
        %v383 = vsel %vm313, %v378, %v382
        %v385 = vshrl.u32 %v305, 16
        %v387 = vrot.slane %v385, 4
        %v388 = vshll.u32 %v305, 16
        %v390 = vrot.slane %v388, 5
        %v391 = vor.u32 %v387, %v390
        %v392 = vrot.slane %v391, 4
        %v394 = vshll.u32 %v306, 16
        %v396 = vrot.slane %v394, 5
        %v397 = vsel %vm313, %v392, %v396
        %v399 = vshrl.u32 %v307, 16
        %v401 = vrot.slane %v399, 4
        %v402 = vshll.u32 %v307, 16
        %v404 = vrot.slane %v402, 5
        %v405 = vor.u32 %v401, %v404
        %v406 = vrot.slane %v405, 4
        %v408 = vshll.u32 %v308, 16
        %v410 = vrot.slane %v408, 5
        %v411 = vsel %vm313, %v406, %v410
        %v413 = vshrl.u32 %v309, 16
        %v415 = vrot.slane %v413, 4
        %v416 = vshll.u32 %v309, 16
        %v418 = vrot.slane %v416, 5
        %v419 = vor.u32 %v415, %v418
        %v420 = vrot.slane %v419, 4
        %v422 = vshll.u32 %v310, 16
        %v424 = vrot.slane %v422, 5
        %v425 = vsel %vm313, %v420, %v424
        %426 = vrot.lane.b32.xlu0 %v327, 8
        %v427 = vpop.permute.xlu0 %426
        %428 = vrot.lane.b32.xlu0 %v341, 8
        %v429 = vpop.permute.xlu0 %428
        %430 = vrot.lane.b32.xlu0 %v355, 8
        %v431 = vpop.permute.xlu0 %430
        %432 = vrot.lane.b32.xlu0 %v369, 8
        %v433 = vpop.permute.xlu0 %432
        %434 = vrot.lane.b32.xlu0 %v383, 8
        %v435 = vpop.permute.xlu0 %434
        %436 = vrot.lane.b32.xlu0 %v397, 8
        %v437 = vpop.permute.xlu0 %436
        %438 = vrot.lane.b32.xlu0 %v411, 8
        %v439 = vpop.permute.xlu0 %438
        %440 = vrot.lane.b32.xlu0 %v425, 8
        %v441 = vpop.permute.xlu0 %440
        %vm450 = vcmask 93248
        %451 = vst.msk [vmem:[#allocation2] sm:$0xf] %vm450, %v427
        %452 = vst.msk [vmem:[#allocation2 + $0x4] sm:$0xf] %vm450, %v429
        %453 = vst.msk [vmem:[#allocation2 + $0x8] sm:$0xf] %vm450, %v431
        %454 = vst.msk [vmem:[#allocation2 + $0xc] sm:$0xf] %vm450, %v433
        %455 = vst.msk [vmem:[#allocation2 + $0x10] sm:$0xf] %vm450, %v435
        %456 = vst.msk [vmem:[#allocation2 + $0x14] sm:$0xf] %vm450, %v437
        %457 = vst.msk [vmem:[#allocation2 + $0x18] sm:$0xf] %vm450, %v439
        %458 = vst.msk [vmem:[#allocation2 + $0x1c] sm:$0xf] %vm450, %v441
        %s459 = scalar_lea.vmem %s207, 144
        %v460 = vld [vmem:[%s459] sm:$0xf]
        %v461 = vld [vmem:[%s459 + $0x8] sm:$0xf]
        %v462 = vld [vmem:[%s459 + $0x10] sm:$0xf]
        %v463 = vld [vmem:[%s459 + $0x18] sm:$0xf]
        %v464 = vld [vmem:[%s459 + $0x20] sm:$0xf]
        %v465 = vld [vmem:[%s459 + $0x28] sm:$0xf]
        %v466 = vld [vmem:[%s459 + $0x30] sm:$0xf]
        %v467 = vld [vmem:[%s459 + $0x38] sm:$0xf]
        %476 = vrot.lane.b32.xlu0 %v460, 12
        %v477 = vpop.permute.xlu0 %476
        %478 = vrot.lane.b32.xlu0 %v461, 12
        %v479 = vpop.permute.xlu0 %478
        %480 = vrot.lane.b32.xlu0 %v462, 12
        %v481 = vpop.permute.xlu0 %480
        %482 = vrot.lane.b32.xlu0 %v463, 12
        %v483 = vpop.permute.xlu0 %482
        %484 = vrot.lane.b32.xlu0 %v464, 12
        %v485 = vpop.permute.xlu0 %484
        %486 = vrot.lane.b32.xlu0 %v465, 12
        %v487 = vpop.permute.xlu0 %486
        %488 = vrot.lane.b32.xlu0 %v466, 12
        %v489 = vpop.permute.xlu0 %488
        %490 = vrot.lane.b32.xlu0 %v467, 12
        %v491 = vpop.permute.xlu0 %490
        %vm500 = vcmask 126048
        %501 = vst.msk [vmem:[#allocation2] sm:$0xf] %vm500, %v477
        %502 = vst.msk [vmem:[#allocation2 + $0x4] sm:$0xf] %vm500, %v479
        %503 = vst.msk [vmem:[#allocation2 + $0x8] sm:$0xf] %vm500, %v481
        %504 = vst.msk [vmem:[#allocation2 + $0xc] sm:$0xf] %vm500, %v483
        %505 = vst.msk [vmem:[#allocation2 + $0x10] sm:$0xf] %vm500, %v485
        %506 = vst.msk [vmem:[#allocation2 + $0x14] sm:$0xf] %vm500, %v487
        %507 = vst.msk [vmem:[#allocation2 + $0x18] sm:$0xf] %vm500, %v489
        %508 = vst.msk [vmem:[#allocation2 + $0x1c] sm:$0xf] %vm500, %v491
        %s509 = scalar_lea.vmem %s207, 216
        %v510 = vld [vmem:[%s509] sm:$0xf]
        %v511 = vld [vmem:[%s509 + $0x8] sm:$0xf]
        %v512 = vld [vmem:[%s509 + $0x10] sm:$0xf]
        %v513 = vld [vmem:[%s509 + $0x18] sm:$0xf]
        %v514 = vld [vmem:[%s509 + $0x20] sm:$0xf]
        %v515 = vld [vmem:[%s509 + $0x28] sm:$0xf]
        %v516 = vld [vmem:[%s509 + $0x30] sm:$0xf]
        %v517 = vld [vmem:[%s509 + $0x38] sm:$0xf]
        %526 = vrot.lane.b32.xlu0 %v510, 16
        %v527 = vpop.permute.xlu0 %526
        %528 = vrot.lane.b32.xlu0 %v511, 16
        %v529 = vpop.permute.xlu0 %528
        %530 = vrot.lane.b32.xlu0 %v512, 16
        %v531 = vpop.permute.xlu0 %530
        %532 = vrot.lane.b32.xlu0 %v513, 16
        %v533 = vpop.permute.xlu0 %532
        %534 = vrot.lane.b32.xlu0 %v514, 16
        %v535 = vpop.permute.xlu0 %534
        %536 = vrot.lane.b32.xlu0 %v515, 16
        %v537 = vpop.permute.xlu0 %536
        %538 = vrot.lane.b32.xlu0 %v516, 16
        %v539 = vpop.permute.xlu0 %538
        %540 = vrot.lane.b32.xlu0 %v517, 16
        %v541 = vpop.permute.xlu0 %540
        %vm550 = vcmask 158848
        %551 = vst.msk [vmem:[#allocation2] sm:$0xf] %vm550, %v527
        %552 = vst.msk [vmem:[#allocation2 + $0x4] sm:$0xf] %vm550, %v529
        %553 = vst.msk [vmem:[#allocation2 + $0x8] sm:$0xf] %vm550, %v531
        %554 = vst.msk [vmem:[#allocation2 + $0xc] sm:$0xf] %vm550, %v533
        %555 = vst.msk [vmem:[#allocation2 + $0x10] sm:$0xf] %vm550, %v535
        %556 = vst.msk [vmem:[#allocation2 + $0x14] sm:$0xf] %vm550, %v537
        %557 = vst.msk [vmem:[#allocation2 + $0x18] sm:$0xf] %vm550, %v539
        %558 = vst.msk [vmem:[#allocation2 + $0x1c] sm:$0xf] %vm550, %v541
        %v559 = vld [vmem:[%s459] sm:$0xf]
        %v560 = vld [vmem:[%s459 + $0x4] sm:$0x1]
        %v561 = vld [vmem:[%s459 + $0x8] sm:$0xf]
        %v562 = vld [vmem:[%s459 + $0xc] sm:$0x1]
        %v563 = vld [vmem:[%s459 + $0x10] sm:$0xf]
        %v564 = vld [vmem:[%s459 + $0x14] sm:$0x1]
        %v565 = vld [vmem:[%s459 + $0x18] sm:$0xf]
        %v566 = vld [vmem:[%s459 + $0x1c] sm:$0x1]
        %v567 = vld [vmem:[%s459 + $0x20] sm:$0xf]
        %v568 = vld [vmem:[%s459 + $0x24] sm:$0x1]
        %v569 = vld [vmem:[%s459 + $0x28] sm:$0xf]
        %v570 = vld [vmem:[%s459 + $0x2c] sm:$0x1]
        %v571 = vld [vmem:[%s459 + $0x30] sm:$0xf]
        %v572 = vld [vmem:[%s459 + $0x34] sm:$0x1]
        %v573 = vld [vmem:[%s459 + $0x38] sm:$0xf]
        %v574 = vld [vmem:[%s459 + $0x3c] sm:$0x1]
        %v576 = vshrl.u32 %v559, 16
        %v578 = vrot.slane %v576, 4
        %v579 = vshll.u32 %v559, 16
        %v581 = vrot.slane %v579, 5
        %v582 = vor.u32 %v578, %v581
        %v583 = vrot.slane %v582, 4
        %v585 = vshll.u32 %v560, 16
        %v587 = vrot.slane %v585, 5
        %v588 = vsel %vm313, %v583, %v587
        %v590 = vshrl.u32 %v561, 16
        %v592 = vrot.slane %v590, 4
        %v593 = vshll.u32 %v561, 16
        %v595 = vrot.slane %v593, 5
        %v596 = vor.u32 %v592, %v595
        %v597 = vrot.slane %v596, 4
        %v599 = vshll.u32 %v562, 16
        %v601 = vrot.slane %v599, 5
        %v602 = vsel %vm313, %v597, %v601
        %v604 = vshrl.u32 %v563, 16
        %v606 = vrot.slane %v604, 4
        %v607 = vshll.u32 %v563, 16
        %v609 = vrot.slane %v607, 5
        %v610 = vor.u32 %v606, %v609
        %v611 = vrot.slane %v610, 4
        %v613 = vshll.u32 %v564, 16
        %v615 = vrot.slane %v613, 5
        %v616 = vsel %vm313, %v611, %v615
        %v618 = vshrl.u32 %v565, 16
        %v620 = vrot.slane %v618, 4
        %v621 = vshll.u32 %v565, 16
        %v623 = vrot.slane %v621, 5
        %v624 = vor.u32 %v620, %v623
        %v625 = vrot.slane %v624, 4
        %v627 = vshll.u32 %v566, 16
        %v629 = vrot.slane %v627, 5
        %v630 = vsel %vm313, %v625, %v629
        %v632 = vshrl.u32 %v567, 16
        %v634 = vrot.slane %v632, 4
        %v635 = vshll.u32 %v567, 16
        %v637 = vrot.slane %v635, 5
        %v638 = vor.u32 %v634, %v637
        %v639 = vrot.slane %v638, 4
        %v641 = vshll.u32 %v568, 16
        %v643 = vrot.slane %v641, 5
        %v644 = vsel %vm313, %v639, %v643
        %v646 = vshrl.u32 %v569, 16
        %v648 = vrot.slane %v646, 4
        %v649 = vshll.u32 %v569, 16
        %v651 = vrot.slane %v649, 5
        %v652 = vor.u32 %v648, %v651
        %v653 = vrot.slane %v652, 4
        %v655 = vshll.u32 %v570, 16
        %v657 = vrot.slane %v655, 5
        %v658 = vsel %vm313, %v653, %v657
        %v660 = vshrl.u32 %v571, 16
        %v662 = vrot.slane %v660, 4
        %v663 = vshll.u32 %v571, 16
        %v665 = vrot.slane %v663, 5
        %v666 = vor.u32 %v662, %v665
        %v667 = vrot.slane %v666, 4
        %v669 = vshll.u32 %v572, 16
        %v671 = vrot.slane %v669, 5
        %v672 = vsel %vm313, %v667, %v671
        %v674 = vshrl.u32 %v573, 16
        %v676 = vrot.slane %v674, 4
        %v677 = vshll.u32 %v573, 16
        %v679 = vrot.slane %v677, 5
        %v680 = vor.u32 %v676, %v679
        %v681 = vrot.slane %v680, 4
        %v683 = vshll.u32 %v574, 16
        %v685 = vrot.slane %v683, 5
        %v686 = vsel %vm313, %v681, %v685
        %687 = vrot.lane.b32.xlu0 %v588, 20
        %v688 = vpop.permute.xlu0 %687
        %689 = vrot.lane.b32.xlu0 %v602, 20
        %v690 = vpop.permute.xlu0 %689
        %691 = vrot.lane.b32.xlu0 %v616, 20
        %v692 = vpop.permute.xlu0 %691
        %693 = vrot.lane.b32.xlu0 %v630, 20
        %v694 = vpop.permute.xlu0 %693
        %695 = vrot.lane.b32.xlu0 %v644, 20
        %v696 = vpop.permute.xlu0 %695
        %697 = vrot.lane.b32.xlu0 %v658, 20
        %v698 = vpop.permute.xlu0 %697
        %699 = vrot.lane.b32.xlu0 %v672, 20
        %v700 = vpop.permute.xlu0 %699
        %701 = vrot.lane.b32.xlu0 %v686, 20
        %v702 = vpop.permute.xlu0 %701
        %vm711 = vcmask 191648
        %712 = vst.msk [vmem:[#allocation2] sm:$0xf] %vm711, %v688
        %713 = vst.msk [vmem:[#allocation2 + $0x4] sm:$0xf] %vm711, %v690
        %714 = vst.msk [vmem:[#allocation2 + $0x8] sm:$0xf] %vm711, %v692
        %715 = vst.msk [vmem:[#allocation2 + $0xc] sm:$0xf] %vm711, %v694
        %716 = vst.msk [vmem:[#allocation2 + $0x10] sm:$0xf] %vm711, %v696
        %717 = vst.msk [vmem:[#allocation2 + $0x14] sm:$0xf] %vm711, %v698
        %718 = vst.msk [vmem:[#allocation2 + $0x18] sm:$0xf] %vm711, %v700
        %719 = vst.msk [vmem:[#allocation2 + $0x1c] sm:$0xf] %vm711, %v702
        %s720 = scalar_lea.vmem %s207, 8
        %v721 = vld [vmem:[%s720] sm:$0xf]
        %v722 = vld [vmem:[%s720 + $0x8] sm:$0xf]
        %v723 = vld [vmem:[%s720 + $0x10] sm:$0xf]
        %v724 = vld [vmem:[%s720 + $0x18] sm:$0xf]
        %v725 = vld [vmem:[%s720 + $0x20] sm:$0xf]
        %v726 = vld [vmem:[%s720 + $0x28] sm:$0xf]
        %v727 = vld [vmem:[%s720 + $0x30] sm:$0xf]
        %v728 = vld [vmem:[%s720 + $0x38] sm:$0xf]
        %737 = vrot.lane.b32.xlu0 %v721, 24
        %v738 = vpop.permute.xlu0 %737
        %739 = vrot.lane.b32.xlu0 %v722, 24
        %v740 = vpop.permute.xlu0 %739
        %741 = vrot.lane.b32.xlu0 %v723, 24
        %v742 = vpop.permute.xlu0 %741
        %743 = vrot.lane.b32.xlu0 %v724, 24
        %v744 = vpop.permute.xlu0 %743
        %745 = vrot.lane.b32.xlu0 %v725, 24
        %v746 = vpop.permute.xlu0 %745
        %747 = vrot.lane.b32.xlu0 %v726, 24
        %v748 = vpop.permute.xlu0 %747
        %749 = vrot.lane.b32.xlu0 %v727, 24
        %v750 = vpop.permute.xlu0 %749
        %751 = vrot.lane.b32.xlu0 %v728, 24
        %v752 = vpop.permute.xlu0 %751
        %vm761 = vcmask 224448
        %762 = vst.msk [vmem:[#allocation2] sm:$0xf] %vm761, %v738
        %763 = vst.msk [vmem:[#allocation2 + $0x4] sm:$0xf] %vm761, %v740
        %764 = vst.msk [vmem:[#allocation2 + $0x8] sm:$0xf] %vm761, %v742
        %765 = vst.msk [vmem:[#allocation2 + $0xc] sm:$0xf] %vm761, %v744
        %766 = vst.msk [vmem:[#allocation2 + $0x10] sm:$0xf] %vm761, %v746
        %767 = vst.msk [vmem:[#allocation2 + $0x14] sm:$0xf] %vm761, %v748
        %768 = vst.msk [vmem:[#allocation2 + $0x18] sm:$0xf] %vm761, %v750
        %769 = vst.msk [vmem:[#allocation2 + $0x1c] sm:$0xf] %vm761, %v752
        %s770 = scalar_lea.vmem %s207, 80
        %v771 = vld [vmem:[%s770] sm:$0xf]
        %v772 = vld [vmem:[%s770 + $0x8] sm:$0xf]
        %v773 = vld [vmem:[%s770 + $0x10] sm:$0xf]
        %v774 = vld [vmem:[%s770 + $0x18] sm:$0xf]
        %v775 = vld [vmem:[%s770 + $0x20] sm:$0xf]
        %v776 = vld [vmem:[%s770 + $0x28] sm:$0xf]
        %v777 = vld [vmem:[%s770 + $0x30] sm:$0xf]
        %v778 = vld [vmem:[%s770 + $0x38] sm:$0xf]
        %787 = vrot.lane.b32.xlu0 %v771, 28
        %v788 = vpop.permute.xlu0 %787
        %789 = vrot.lane.b32.xlu0 %v772, 28
        %v790 = vpop.permute.xlu0 %789
        %791 = vrot.lane.b32.xlu0 %v773, 28
        %v792 = vpop.permute.xlu0 %791
        %793 = vrot.lane.b32.xlu0 %v774, 28
        %v794 = vpop.permute.xlu0 %793
        %795 = vrot.lane.b32.xlu0 %v775, 28
        %v796 = vpop.permute.xlu0 %795
        %797 = vrot.lane.b32.xlu0 %v776, 28
        %v798 = vpop.permute.xlu0 %797
        %799 = vrot.lane.b32.xlu0 %v777, 28
        %v800 = vpop.permute.xlu0 %799
        %801 = vrot.lane.b32.xlu0 %v778, 28
        %v802 = vpop.permute.xlu0 %801
        %vm811 = vcmask 257248
        %812 = vst.msk [vmem:[#allocation2] sm:$0xf] %vm811, %v788
        %813 = vst.msk [vmem:[#allocation2 + $0x4] sm:$0xf] %vm811, %v790
        %814 = vst.msk [vmem:[#allocation2 + $0x8] sm:$0xf] %vm811, %v792
        %815 = vst.msk [vmem:[#allocation2 + $0xc] sm:$0xf] %vm811, %v794
        %816 = vst.msk [vmem:[#allocation2 + $0x10] sm:$0xf] %vm811, %v796
        %817 = vst.msk [vmem:[#allocation2 + $0x14] sm:$0xf] %vm811, %v798
        %818 = vst.msk [vmem:[#allocation2 + $0x18] sm:$0xf] %vm811, %v800
        %819 = vst.msk [vmem:[#allocation2 + $0x1c] sm:$0xf] %vm811, %v802
        %v820 = vld [vmem:[%s720] sm:$0xf]
        %v821 = vld [vmem:[%s720 + $0x4] sm:$0x1]
        %v822 = vld [vmem:[%s720 + $0x8] sm:$0xf]
        %v823 = vld [vmem:[%s720 + $0xc] sm:$0x1]
        %v824 = vld [vmem:[%s720 + $0x10] sm:$0xf]
        %v825 = vld [vmem:[%s720 + $0x14] sm:$0x1]
        %v826 = vld [vmem:[%s720 + $0x18] sm:$0xf]
        %v827 = vld [vmem:[%s720 + $0x1c] sm:$0x1]
        %v828 = vld [vmem:[%s720 + $0x20] sm:$0xf]
        %v829 = vld [vmem:[%s720 + $0x24] sm:$0x1]
        %v830 = vld [vmem:[%s720 + $0x28] sm:$0xf]
        %v831 = vld [vmem:[%s720 + $0x2c] sm:$0x1]
        %v832 = vld [vmem:[%s720 + $0x30] sm:$0xf]
        %v833 = vld [vmem:[%s720 + $0x34] sm:$0x1]
        %v834 = vld [vmem:[%s720 + $0x38] sm:$0xf]
        %v835 = vld [vmem:[%s720 + $0x3c] sm:$0x1]
        %v837 = vshrl.u32 %v820, 16
        %v839 = vrot.slane %v837, 4
        %v840 = vshll.u32 %v820, 16
        %v842 = vrot.slane %v840, 5
        %v843 = vor.u32 %v839, %v842
        %v844 = vrot.slane %v843, 4
        %v846 = vshll.u32 %v821, 16
        %v848 = vrot.slane %v846, 5
        %v849 = vsel %vm313, %v844, %v848
        %v851 = vshrl.u32 %v822, 16
        %v853 = vrot.slane %v851, 4
        %v854 = vshll.u32 %v822, 16
        %v856 = vrot.slane %v854, 5
        %v857 = vor.u32 %v853, %v856
        %v858 = vrot.slane %v857, 4
        %v860 = vshll.u32 %v823, 16
        %v862 = vrot.slane %v860, 5
        %v863 = vsel %vm313, %v858, %v862
        %v865 = vshrl.u32 %v824, 16
        %v867 = vrot.slane %v865, 4
        %v868 = vshll.u32 %v824, 16
        %v870 = vrot.slane %v868, 5
        %v871 = vor.u32 %v867, %v870
        %v872 = vrot.slane %v871, 4
        %v874 = vshll.u32 %v825, 16
        %v876 = vrot.slane %v874, 5
        %v877 = vsel %vm313, %v872, %v876
        %v879 = vshrl.u32 %v826, 16
        %v881 = vrot.slane %v879, 4
        %v882 = vshll.u32 %v826, 16
        %v884 = vrot.slane %v882, 5
        %v885 = vor.u32 %v881, %v884
        %v886 = vrot.slane %v885, 4
        %v888 = vshll.u32 %v827, 16
        %v890 = vrot.slane %v888, 5
        %v891 = vsel %vm313, %v886, %v890
        %v893 = vshrl.u32 %v828, 16
        %v895 = vrot.slane %v893, 4
        %v896 = vshll.u32 %v828, 16
        %v898 = vrot.slane %v896, 5
        %v899 = vor.u32 %v895, %v898
        %v900 = vrot.slane %v899, 4
        %v902 = vshll.u32 %v829, 16
        %v904 = vrot.slane %v902, 5
        %v905 = vsel %vm313, %v900, %v904
        %v907 = vshrl.u32 %v830, 16
        %v909 = vrot.slane %v907, 4
        %v910 = vshll.u32 %v830, 16
        %v912 = vrot.slane %v910, 5
        %v913 = vor.u32 %v909, %v912
        %v914 = vrot.slane %v913, 4
        %v916 = vshll.u32 %v831, 16
        %v918 = vrot.slane %v916, 5
        %v919 = vsel %vm313, %v914, %v918
        %v921 = vshrl.u32 %v832, 16
        %v923 = vrot.slane %v921, 4
        %v924 = vshll.u32 %v832, 16
        %v926 = vrot.slane %v924, 5
        %v927 = vor.u32 %v923, %v926
        %v928 = vrot.slane %v927, 4
        %v930 = vshll.u32 %v833, 16
        %v932 = vrot.slane %v930, 5
        %v933 = vsel %vm313, %v928, %v932
        %v935 = vshrl.u32 %v834, 16
        %v937 = vrot.slane %v935, 4
        %v938 = vshll.u32 %v834, 16
        %v940 = vrot.slane %v938, 5
        %v941 = vor.u32 %v937, %v940
        %v942 = vrot.slane %v941, 4
        %v944 = vshll.u32 %v835, 16
        %v946 = vrot.slane %v944, 5
        %v947 = vsel %vm313, %v942, %v946
        %948 = vrot.lane.b32.xlu0 %v849, 32
        %v949 = vpop.permute.xlu0 %948
        %950 = vrot.lane.b32.xlu0 %v863, 32
        %v951 = vpop.permute.xlu0 %950
        %952 = vrot.lane.b32.xlu0 %v877, 32
        %v953 = vpop.permute.xlu0 %952
        %954 = vrot.lane.b32.xlu0 %v891, 32
        %v955 = vpop.permute.xlu0 %954
        %956 = vrot.lane.b32.xlu0 %v905, 32
        %v957 = vpop.permute.xlu0 %956
        %958 = vrot.lane.b32.xlu0 %v919, 32
        %v959 = vpop.permute.xlu0 %958
        %960 = vrot.lane.b32.xlu0 %v933, 32
        %v961 = vpop.permute.xlu0 %960
        %962 = vrot.lane.b32.xlu0 %v947, 32
        %v963 = vpop.permute.xlu0 %962
        %vm972 = vcmask 290048
        %973 = vst.msk [vmem:[#allocation2] sm:$0xf] %vm972, %v949
        %974 = vst.msk [vmem:[#allocation2 + $0x4] sm:$0xf] %vm972, %v951
        %975 = vst.msk [vmem:[#allocation2 + $0x8] sm:$0xf] %vm972, %v953
        %976 = vst.msk [vmem:[#allocation2 + $0xc] sm:$0xf] %vm972, %v955
        %977 = vst.msk [vmem:[#allocation2 + $0x10] sm:$0xf] %vm972, %v957
        %978 = vst.msk [vmem:[#allocation2 + $0x14] sm:$0xf] %vm972, %v959
        %979 = vst.msk [vmem:[#allocation2 + $0x18] sm:$0xf] %vm972, %v961
        %980 = vst.msk [vmem:[#allocation2 + $0x1c] sm:$0xf] %vm972, %v963
      $region36: #{downsample_pallas.1} parent=31 // pred_fallthru
        _
      %v981 = vld [vmem:[%s211] sm:$0x3]
      %v982 = vld [vmem:[#allocation2] sm:$0xf]
      %v983 = vld [vmem:[#allocation2 + $0x4] sm:$0xf]
      %v984 = vld [vmem:[#allocation2 + $0x8] sm:$0xf]
      %v985 = vld [vmem:[#allocation2 + $0xc] sm:$0xf]
      %v986 = vld [vmem:[#allocation2 + $0x10] sm:$0xf]
      %v987 = vld [vmem:[#allocation2 + $0x14] sm:$0xf]
      %v988 = vld [vmem:[#allocation2 + $0x18] sm:$0xf]
      %v989 = vld [vmem:[#allocation2 + $0x1c] sm:$0xf]
      %v990 = vld [vmem:[%s215] sm:$0xf]
      %992 = vset.pattern.permute.xlu0 0
      %993 = vperm.xlu0 %992, %v990
      %v994 = vpop.permute.xlu0 %993
      %v1004 = vunpack.c.l.b16 %v982
      %v1005 = vunpack.c.l.b16 %v983
      %v1006 = vunpack.c.l.b16 %v984
      %v1007 = vunpack.c.l.b16 %v985
      %v1008 = vunpack.c.l.b16 %v986
      %v1009 = vunpack.c.l.b16 %v987
      %v1010 = vunpack.c.l.b16 %v988
      %v1011 = vunpack.c.l.b16 %v989
      %v1012 = vpack.c.b16 %v1005, %v1004
      %v1013 = vpack.c.b16 %v1007, %v1006
      %v1014 = vpack.c.b16 %v1009, %v1008
      %v1015 = vpack.c.b16 %v1011, %v1010
      %vm1016 = vcmask 293888
      %v1018 = vsel %vm1016, %v981, 0
      %v1021 = vsel %vm1016, %v1012, 0
      %v1024 = vsel %vm1016, %v1013, 0
      %v1027 = vsel %vm1016, %v1014, 0
      %v1030 = vsel %vm1016, %v1015, 0
      %1032 = vmatprep.subr.bf16.mxu0 0
      %1033 = vmatpush1.bf16.xpose.msra.mxu0 0
      %1034 = vmatprep.subr.bf16.mxu0 0
      %1035 = vmatpush1.bf16.xpose.msra.mxu0 0
      %1036 = vmatprep.subr.bf16.mxu0 0
      %1037 = vmatpush1.bf16.xpose.msra.mxu0 0
      %1038 = vmatprep.subr.bf16.mxu0 0
      %1039 = vmatpush1.bf16.xpose.msra.mxu0 0
      %1040 = vmatprep.subr.bf16.mxu0 0
      %1041 = vmatpush1.bf16.xpose.msra.mxu0 %v1030
      %1042 = vmatprep.subr.bf16.mxu0 0
      %1043 = vmatpush1.bf16.xpose.msra.mxu0 %v1027
      %1044 = vmatprep.subr.bf16.mxu0 0
      %1045 = vmatpush1.bf16.xpose.msra.mxu0 %v1024
      %1046 = vmatprep.subr.bf16.mxu0 0
      %1047 = vmatpush1.bf16.xpose.msra.mxu0 %v1021
      %1048 = vmatprep.subr.bf16.mxu0 0
      %1049 = vmatpush2.bf16.xpose.msra.mxu0 0
      %1050 = vmatprep.subr.bf16.mxu0 0
      %1051 = vmatpush2.bf16.xpose.msra.mxu0 0
      %1052 = vmatprep.subr.bf16.mxu0 0
      %1053 = vmatpush2.bf16.xpose.msra.mxu0 0
      %1054 = vmatprep.subr.bf16.mxu0 0
      %1055 = vmatpush2.bf16.xpose.msra.mxu0 0
      %1056 = vmatprep.subr.bf16.mxu0 0
      %1057 = vmatpush2.bf16.xpose.msra.mxu0 0
      %1058 = vmatprep.subr.bf16.mxu0 0
      %1059 = vmatpush2.bf16.xpose.msra.mxu0 0
      %1060 = vmatprep.subr.bf16.mxu0 0
      %1061 = vmatpush2.bf16.xpose.msra.mxu0 0
      %1062 = vmatprep.subr.bf16.mxu0 0
      %1063 = vmatpush2.bf16.xpose.msra.mxu0 0
      %1064 = vmatprep.mubr.bf16.mxu0 0
      %1065 = vmatmul.mubr.bf16.gmra.mxu0 %v1018
      %v1066 = vpop.f32.mrf.mxu0
      %v1067 = vadd.f32 %v994, %v1066
      %v1068 = vpop.f32.mrf.mxu0
      %v1069 = vpop.f32.mrf.mxu0
      %v1070 = vpop.f32.mrf.mxu0
      %1071 = vdwg.mxu0
      %vm1072 = vcmask 519168
      %1073 = vst.msk [vmem:[%s222] sm:$0xf] %vm1072, %v1067
      %p1074 = scmp.lt.s32.totalorder %s18, 1
      %s1075 = scalar_select %p1074, %s18, 1
      %p1076 = scmp.lt.s32.totalorder %s19, 0
      %s1077 = scalar_select %p1076, %s19, 0
      %s1078 = sadd.s32 %s1077, %s1075
      %s1079 = smul.addr %s1078, 4
      %s1080 = scalar_lea.vmem %s3, %s1079
      // Predicated region
      $region37: #{downsample_pallas.1} parent=31 // pred_check
        %p1081 = pneg %p124
      $region38: #{downsample_pallas.1} parent=31 // pred_check_branch
        %1083 = sbr.rel (%p1081) target = $region40
      $region39: #{downsample_pallas.1} parent=31 // pred_region
        _
      $region40: #{downsample_pallas.1} parent=31 // pred_fallthru
        _
    $region32: #{downsample_pallas.1} parent=5 // pred_fallthru
      _
    %p1084 = scmp.le.s32.totalorder 2, %s9
    // Predicated region
    $region41: #{downsample_pallas.1} parent=5 // pred_check
      %p1085 = pneg %p1084
    $region42: #{downsample_pallas.1} parent=5 // pred_check_branch
      %1087 = sbr.rel (%p1085) target = $region44
    $region43: #{downsample_pallas.1} parent=5 // pred_region
      %s1088 = ssub.s32 %s9, 2
      // Predicated region
      $region45: #{downsample_pallas.1} parent=43 // pred_check
        %p1089 = pneg %p130
      $region46: #{downsample_pallas.1} parent=43 // pred_check_branch
        %1091 = sbr.rel (%p1089) target = $region48
      $region47: #{downsample_pallas.1} parent=43 // pred_region
        %p1092 = scmp.lt.s32.totalorder %s20, 1
        %s1093 = scalar_select %p1092, %s20, 1
        %p1094 = scmp.lt.s32.totalorder %s21, 0
        %s1095 = scalar_select %p1094, %s21, 0
        %s1096 = sadd.s32 %s1095, %s1093
        %s1097 = smul.addr %s1096, 4
        %s1098 = scalar_lea.vmem %s3, %s1097
      $region48: #{downsample_pallas.1} parent=43 // pred_fallthru
        _
    $region44: #{downsample_pallas.1} parent=5 // pred_fallthru
      _
  $region6: #{downsample_pallas.1} parent=0 // loop_footer
    %s13 = sadd.s32 1, %s9
  $region7: #{downsample_pallas.1} parent=0 // loop_footer_branch
    %8 = sbr.rel target = $region3
  $region8: #{downsample_pallas.1} parent=0 // loop_exit
    _

</llo_original>
